<compile_context>
chip_gen: v5e
topology: v5e:2x2
jax: 0.10.0
libtpu: 0.0.40
codegen_flags: <defaults>
</compile_context>

<pallas_src>
import numpy as np
import jax
import jax.numpy as jnp
from jax.experimental import pallas as pl
from jax.experimental.pallas import tpu as pltpu


# ----------------------------------------------------------------------------
# Static bilinear interpolation matrix (matches F.interpolate, mode='bilinear',
# align_corners=False; the node axis has scale 1 so it is an exact identity).
# ----------------------------------------------------------------------------
def bilinear_interp_matrix(out_size: int, in_size: int) -> np.ndarray:
    mat = np.zeros((out_size, in_size), dtype=np.float32)
    scale = in_size / out_size
    for j in range(out_size):
        src = (j + 0.5) * scale - 0.5
        src = max(src, 0.0)                       # PyTorch clamps negative src
        i0 = min(int(np.floor(src)), in_size - 1)
        i1 = min(i0 + 1, in_size - 1)
        w1 = src - i0
        mat[j, i0] += 1.0 - w1
        mat[j, i1] += w1
    return mat


# ----------------------------------------------------------------------------
# Fusion kernel: three gated pyramid branches, per-branch 1x1 fusion conv with
# the bilinear upsample pre-folded into its weights, plus per-tile raw
# BatchNorm partials (column sums / sums of squares).
# ----------------------------------------------------------------------------
def _make_fusion_kernel(T: int, C: int, tm: int, m_valid: int, needs_mask: bool):
    TC, T3C, T6C = T * C, (T // 3) * C, (T // 6) * C

    def kernel(x_ref, w1_ref, b1_ref, w2_ref, b2_ref, w3_ref, b3_ref,
               wfa_ref, wfb_ref, wfc_ref, bf_ref,
               out_ref, sum_ref, sq_ref):
        xb = x_ref[...]                                           # [tm, T*C] bf16

        def gated_branch(w_ref, b_ref, half):
            # One 2-D MXU matmul per branch; columns are [gate | filter] so the
            # GLU gating is a pure element-wise split (no reshapes / concat).
            y = jnp.dot(xb, w_ref[...],
                        preferred_element_type=jnp.float32) + b_ref[...]
            return (jax.nn.sigmoid(y[:, :half]) *
                    jnp.tanh(y[:, half:])).astype(jnp.bfloat16)

        a1 = gated_branch(w1_ref, b1_ref, TC)                     # [tm, T*C]
        a2 = gated_branch(w2_ref, b2_ref, T3C)                    # [tm, T3*C]
        a3 = gated_branch(w3_ref, b3_ref, T6C)                    # [tm, T6*C]

        fusion = (jnp.dot(a1, wfa_ref[...], preferred_element_type=jnp.float32)
                  + jnp.dot(a2, wfb_ref[...], preferred_element_type=jnp.float32)
                  + jnp.dot(a3, wfc_ref[...], preferred_element_type=jnp.float32)
                  + bf_ref[...])                                  # [tm, T*C] f32

        out_ref[...] = fusion.astype(out_ref.dtype)               # lane-dense store

        if needs_mask:                                            # padded last tile
            row0 = pl.program_id(0) * tm
            rid = jax.lax.broadcasted_iota(jnp.int32, (tm, 1), 0) + row0
            fusion = fusion * (rid < m_valid).astype(jnp.float32)

        # Raw per-tile column partials; the tiny fold over tiles and time steps
        # happens in plain JAX (no in-kernel lane-sliced reduction loop).
        sum_ref[...] = jnp.sum(fusion, axis=0, keepdims=True)     # [1, T*C]
        sq_ref[...] = jnp.sum(fusion * fusion, axis=0, keepdims=True)

    return kernel


# ----------------------------------------------------------------------------
# Spec / sizing helpers.
# ----------------------------------------------------------------------------
def _const_spec(shape):
    """Grid-invariant (weight) input: full block, single-buffered if possible."""
    nd = len(shape)
    idx = lambda *_: (0,) * nd
    buffered = getattr(pl, "Buffered", None)
    if buffered is not None:
        try:
            return pl.BlockSpec(shape, idx, pipeline_mode=buffered(1))
        except TypeError:
            pass
    return pl.BlockSpec(shape, idx)


def _vmem_limit_bytes() -> int:
    cap = 64 << 20
    try:
        info = pltpu.get_tpu_info()
        cap = int(getattr(info, "vmem_capacity_bytes", cap))
    except Exception:
        cap = 64 << 20
    # 128 MiB parts (v5e/v6e): big tiles to amortize per-step overhead.
    # 64 MiB parts (v7x): leave headroom for compiler scratch / spill.
    return (96 << 20) if cap >= (128 << 20) else (40 << 20)


def _choose_tm(M: int, TC: int, weight_vmem_bytes: int, vmem_limit_bytes: int) -> int:
    # Conservative per-row VMEM working set: bf16 x / out double buffers, bf16
    # gated activations, f32 pre-activation and fusion temporaries.
    per_row = 32 * TC
    budget = vmem_limit_bytes - weight_vmem_bytes - (4 << 20)
    cap = max(8, budget // per_row)
    cap = min(cap, 1024)                    # >=512-row tiles already hit ~85% of HBM roofline
    tm = min(cap, max(8, -(-M // 2)))       # >=2 tiles so both v7x TensorCores get work
    if tm >= 256:
        tm -= tm % 256                      # keep 256x256 MXU passes full on v6e/v7x
    else:
        tm -= tm % 8
    return int(max(8, min(tm, M)))


# ----------------------------------------------------------------------------
# Wrapper: PyTorch-equivalent forward (NCHW in, NCHW out).
# ----------------------------------------------------------------------------
def pyr_temp_conv(x_nchw, params, *, tm=None, eps=1e-5):
    B, C, N, T = x_nchw.shape
    assert T % 6 == 0, "time axis must be divisible by 6 (pyr3 stride)"
    M = B * N
    T3, T6 = T // 3, T // 6
    TC, T3C, T6C = T * C, T3 * C, T6 * C
    f32, bf16 = jnp.float32, jnp.bfloat16

    # --- parameter folding (tiny, trace-time) --------------------------------
    # NOTE: when importing real PyTorch Conv2d weights of shape [2C, C, 1, k],
    # permute them to (tap-major, channel) row order, i.e.
    # w[k_tap*C + c, out] = conv_w[out, c, 0, k_tap].
    eyeT = np.eye(T, dtype=np.float32)
    eyeT3 = np.eye(T3, dtype=np.float32)
    eyeT6 = np.eye(T6, dtype=np.float32)
    i3t = bilinear_interp_matrix(T, T3).T       # [T3, T]
    i6t = bilinear_interp_matrix(T, T6).T       # [T6, T]

    w1, w2, w3, wf = params["w1"], params["w2"], params["w3"], params["wf"]
    b1, b2, b3, bf = params["b1"], params["b2"], params["b3"], params["bf"]

    W1 = jnp.concatenate([jnp.kron(eyeT, w1[:, :C]),
                          jnp.kron(eyeT, w1[:, C:])], axis=1).astype(bf16)
    W2 = jnp.concatenate([jnp.kron(eyeT3, w2[:, :C]),
                          jnp.kron(eyeT3, w2[:, C:])], axis=1).astype(bf16)
    W3 = jnp.concatenate([jnp.kron(eyeT6, w3[:, :C]),
                          jnp.kron(eyeT6, w3[:, C:])], axis=1).astype(bf16)
    B1 = jnp.concatenate([jnp.tile(b1[:, :C], (1, T)),
                          jnp.tile(b1[:, C:], (1, T))], axis=1)    # [1, 2*T*C] f32
    B2 = jnp.concatenate([jnp.tile(b2[:, :C], (1, T3)),
                          jnp.tile(b2[:, C:], (1, T3))], axis=1)
    B3 = jnp.concatenate([jnp.tile(b3[:, :C], (1, T6)),
                          jnp.tile(b3[:, C:], (1, T6))], axis=1)
    # 1x1 fusion conv split per branch; bilinear upsample folded into branch 2/3.
    WFA = jnp.kron(eyeT, wf[:C, :]).astype(bf16)                   # [T*C,  T*C]
    WFB = jnp.kron(i3t, wf[C:2 * C, :]).astype(bf16)               # [T3*C, T*C]
    WFC = jnp.kron(i6t, wf[2 * C:, :]).astype(bf16)                # [T6*C, T*C]
    BF = jnp.tile(bf, (1, T))                                      # [1, T*C] f32

    # --- tiling ---------------------------------------------------------------
    vmem_limit = _vmem_limit_bytes()
    # Conservative weight VMEM estimate (x2 in case single-buffering is unavailable).
    wt_bytes = 2 * (TC * 2 * TC + TC * 2 * T3C + TC * 2 * T6C
                    + TC * TC + T3C * TC + T6C * TC)               # bf16 weights
    wt_bytes += 4 * (2 * TC + 2 * T3C + 2 * T6C + TC)              # f32 biases
    wt_bytes *= 2

    if tm is None:
        tm = _choose_tm(M, TC, wt_bytes, vmem_limit)
    tm = int(min(tm, M))
    if M > 8:
        assert tm % 8 == 0, f"tm={tm} must be a multiple of 8"
    n_tiles = pl.cdiv(M, tm)
    M_pad = n_tiles * tm
    needs_mask = M_pad != M

    # --- glue: single lane-dense bf16 activation slab --------------------------
    x2d = jnp.transpose(x_nchw, (0, 2, 3, 1)).reshape(M, TC).astype(bf16)
    if needs_mask:
        x2d = jnp.pad(x2d, ((0, M_pad - M), (0, 0)))

    row_spec = pl.BlockSpec((tm, TC), lambda i: (i, 0))
    stat_spec = pl.BlockSpec((None, 1, TC), lambda i: (i, 0, 0))

    fusion2d, sums, sqs = pl.pallas_call(
        _make_fusion_kernel(T, C, tm, M, needs_mask),
        out_shape=(jax.ShapeDtypeStruct((M_pad, TC), bf16),
                   jax.ShapeDtypeStruct((n_tiles, 1, TC), f32),
                   jax.ShapeDtypeStruct((n_tiles, 1, TC), f32)),
        grid=(n_tiles,),
        in_specs=[
            row_spec,
            _const_spec((TC, 2 * TC)), _const_spec((1, 2 * TC)),
            _const_spec((TC, 2 * T3C)), _const_spec((1, 2 * T3C)),
            _const_spec((TC, 2 * T6C)), _const_spec((1, 2 * T6C)),
            _const_spec((TC, TC)), _const_spec((T3C, TC)), _const_spec((T6C, TC)),
            _const_spec((1, TC)),
        ],
        out_specs=(row_spec, stat_spec, stat_spec),
        compiler_params=pltpu.CompilerParams(
            dimension_semantics=("parallel",),
            vmem_limit_bytes=vmem_limit),
    )(x2d, W1, B1, W2, B2, W3, B3, WFA, WFB, WFC, BF)

    # --- tiny plain-JAX glue: BatchNorm (training-mode batch stats, biased var) -
    count = float(M * T)
    ch_sum = jnp.sum(sums, axis=(0, 1)).reshape(T, C).sum(axis=0)   # [C]
    ch_sq = jnp.sum(sqs, axis=(0, 1)).reshape(T, C).sum(axis=0)     # [C]
    mean = ch_sum / count
    # TODO(synk): E[x^2]-E[x]^2 in f32 can cancel for large-mean activations;
    # switch to a Welford-style per-tile combine if that regime matters.
    var = ch_sq / count - mean * mean
    inv_std = jax.lax.rsqrt(var + eps)
    scale = params["gamma"] * inv_std                               # [C]
    shift = params["beta"] - mean * scale                           # [C]

    # --- BN apply fused by XLA with the final reshape/transpose back to NCHW ---
    fusion = fusion2d[:M].reshape(B, N, T, C).astype(f32)
    out = fusion * scale + shift
    return jnp.transpose(out, (0, 3, 1, 2))


# ----------------------------------------------------------------------------
# Pure-JAX f32 reference (faithful to the PyTorch module) for correctness.
# ----------------------------------------------------------------------------
def reference_forward(x_nchw, p, eps=1e-5):
    B, C, N, T = x_nchw.shape
    x = jnp.transpose(x_nchw, (0, 2, 3, 1)).astype(jnp.float32)    # [B,N,T,C]

    def gated(y):
        return jax.nn.sigmoid(y[..., :C]) * jnp.tanh(y[..., C:])

    i3 = jnp.asarray(bilinear_interp_matrix(T, T // 3))
    i6 = jnp.asarray(bilinear_interp_matrix(T, T // 6))

    x1 = gated(jnp.einsum('bntk,ko->bnto', x, p["w1"]) + p["b1"])
    xr3 = x.reshape(B, N, T // 3, 3 * C)
    x2 = gated(jnp.einsum('bnsk,ko->bnso', xr3, p["w2"]) + p["b2"])
    x2u = jnp.einsum('ts,bnsc->bntc', i3, x2)
    xr6 = x.reshape(B, N, T // 6, 6 * C)
    x3 = gated(jnp.einsum('bnsk,ko->bnso', xr6, p["w3"]) + p["b3"])
    x3u = jnp.einsum('ts,bnsc->bntc', i6, x3)

    cat = jnp.concatenate([x1, x2u, x3u], axis=-1)
    fusion = jnp.einsum('bntk,kc->bntc', cat, p["wf"]) + p["bf"]

    mean = jnp.mean(fusion, axis=(0, 1, 2))
    var = jnp.mean(fusion * fusion, axis=(0, 1, 2)) - mean * mean
    out = (fusion - mean) / jnp.sqrt(var + eps) * p["gamma"] + p["beta"]
    return jnp.transpose(out, (0, 3, 1, 2))


if __name__ == "__main__":
    # Small shapes consistent with [batch, c_in, num_nodes, time_step]
    B, C, N, T = 2, 4, 16, 12

    key = jax.random.PRNGKey(0)
    ks = jax.random.split(key, 11)
    x = jax.random.normal(ks[0], (B, C, N, T), jnp.float32)

    # Deterministic synthetic parameters in matmul form (see import note in
    # pyr_temp_conv for the PyTorch Conv2d weight permutation).
    params = {
        "w1": 0.2 * jax.random.normal(ks[1], (C, 2 * C), jnp.float32),
        "b1": 0.1 * jax.random.normal(ks[2], (1, 2 * C), jnp.float32),
        "w2": 0.2 * jax.random.normal(ks[3], (3 * C, 2 * C), jnp.float32),
        "b2": 0.1 * jax.random.normal(ks[4], (1, 2 * C), jnp.float32),
        "w3": 0.2 * jax.random.normal(ks[5], (6 * C, 2 * C), jnp.float32),
        "b3": 0.1 * jax.random.normal(ks[6], (1, 2 * C), jnp.float32),
        "wf": 0.2 * jax.random.normal(ks[7], (3 * C, C), jnp.float32),
        "bf": 0.1 * jax.random.normal(ks[8], (1, C), jnp.float32),
        "gamma": 1.0 + 0.1 * jax.random.normal(ks[9], (C,), jnp.float32),
        "beta": 0.1 * jax.random.normal(ks[10], (C,), jnp.float32),
    }

    fwd = jax.jit(pyr_temp_conv, static_argnames=("tm",))
    ref = jax.block_until_ready(reference_forward(x, params))

    # tm=None  -> auto-sized (2 tiles, exercises the >=2-tile megacore rule)
    # tm=8     -> 4 tiles (multi-tile partial-stats reduction)
    # tm=24    -> cdiv grid with a zero-padded, row-masked last tile
    for tile in (None, 8, 24):
        out = jax.block_until_ready(fwd(x, params, tm=tile))
        assert out.shape == (B, C, N, T)
        err = jnp.abs(out - ref)
        max_err = float(jnp.max(err))
        mean_err = float(jnp.mean(err))
        # bf16 MXU operands (f32 accumulation) vs f32 reference on a unit-variance
        # normalized output: the gap is bf16 rounding noise; structural bugs
        # produce O(1) errors.
        assert max_err < 2e-1 and mean_err < 5e-2, (tile, max_err, mean_err)
        # BatchNorm structural sanity: per-channel mean ~= beta, std ~= |gamma|.
        ch_mean = jnp.mean(out, axis=(0, 2, 3))
        ch_std = jnp.sqrt(jnp.var(out, axis=(0, 2, 3)))
        assert float(jnp.max(jnp.abs(ch_mean - params["beta"]))) < 5e-2, tile
        assert float(jnp.max(jnp.abs(ch_std - jnp.abs(params["gamma"])))) < 5e-2, tile

    print("KERNEL_OK")
</pallas_src>

<mosaic_0001>
module attributes {stable_mosaic.version = 11 : i64} {
  func.func @kernel(%arg0: i32, %arg1: memref<16x48xbf16, #tpu.memory_space<vmem>>, %arg2: memref<48x96xbf16, #tpu.memory_space<vmem>>, %arg3: memref<1x96xf32, #tpu.memory_space<vmem>>, %arg4: memref<48x32xbf16, #tpu.memory_space<vmem>>, %arg5: memref<1x32xf32, #tpu.memory_space<vmem>>, %arg6: memref<48x16xbf16, #tpu.memory_space<vmem>>, %arg7: memref<1x16xf32, #tpu.memory_space<vmem>>, %arg8: memref<48x48xbf16, #tpu.memory_space<vmem>>, %arg9: memref<16x48xbf16, #tpu.memory_space<vmem>>, %arg10: memref<8x48xbf16, #tpu.memory_space<vmem>>, %arg11: memref<1x48xf32, #tpu.memory_space<vmem>>, %arg12: memref<16x48xbf16, #tpu.memory_space<vmem>>, %arg13: memref<1x1x48xf32, #tpu.memory_space<vmem>>, %arg14: memref<1x1x48xf32, #tpu.memory_space<vmem>>) attributes {dimension_semantics = [#tpu.dimension_semantics<parallel>], iteration_bounds = array<i64: 2>, scalar_prefetch = 0 : i64, scratch_operands = 0 : i64, tpu.core_type = #tpu.core_type<tc>, window_params = [{transform_indices = @transform_0, window_bounds = array<i64: 16, 48>}, {pipeline_mode = #tpu.pipeline_mode<synchronous>, transform_indices = @transform_1, window_bounds = array<i64: 48, 96>}, {pipeline_mode = #tpu.pipeline_mode<synchronous>, transform_indices = @transform_2, window_bounds = array<i64: 1, 96>}, {pipeline_mode = #tpu.pipeline_mode<synchronous>, transform_indices = @transform_3, window_bounds = array<i64: 48, 32>}, {pipeline_mode = #tpu.pipeline_mode<synchronous>, transform_indices = @transform_4, window_bounds = array<i64: 1, 32>}, {pipeline_mode = #tpu.pipeline_mode<synchronous>, transform_indices = @transform_5, window_bounds = array<i64: 48, 16>}, {pipeline_mode = #tpu.pipeline_mode<synchronous>, transform_indices = @transform_6, window_bounds = array<i64: 1, 16>}, {pipeline_mode = #tpu.pipeline_mode<synchronous>, transform_indices = @transform_7, window_bounds = array<i64: 48, 48>}, {pipeline_mode = #tpu.pipeline_mode<synchronous>, transform_indices = @transform_8, window_bounds = array<i64: 16, 48>}, {pipeline_mode = #tpu.pipeline_mode<synchronous>, transform_indices = @transform_9, window_bounds = array<i64: 8, 48>}, {pipeline_mode = #tpu.pipeline_mode<synchronous>, transform_indices = @transform_10, window_bounds = array<i64: 1, 48>}, {transform_indices = @transform_11, window_bounds = array<i64: 16, 48>}, {transform_indices = @transform_12, window_bounds = array<i64: 1, 1, 48>}, {transform_indices = @transform_13, window_bounds = array<i64: 1, 1, 48>}]} {
    %c0 = arith.constant 0 : index
    %c0_0 = arith.constant 0 : index
    %0 = vector.load %arg1[%c0, %c0_0] : memref<16x48xbf16, #tpu.memory_space<vmem>>, vector<16x48xbf16>
    %c0_1 = arith.constant 0 : index
    %c0_2 = arith.constant 0 : index
    %1 = vector.load %arg2[%c0_1, %c0_2] : memref<48x96xbf16, #tpu.memory_space<vmem>>, vector<48x96xbf16>
    %cst = arith.constant dense<0.000000e+00> : vector<16x96xf32>
    %2 = tpu.matmul %0, %1, %cst {dimension_numbers = #tpu.dot_dimension_numbers<[1], [0], [0], [1], [0, 0, 1, 1], [], []>} : vector<16x48xbf16>, vector<48x96xbf16>, vector<16x96xf32> -> vector<16x96xf32>
    %c0_3 = arith.constant 0 : index
    %c0_4 = arith.constant 0 : index
    %3 = vector.load %arg3[%c0_3, %c0_4] : memref<1x96xf32, #tpu.memory_space<vmem>>, vector<1x96xf32>
    %4 = vector.broadcast %3 : vector<1x96xf32> to vector<16x96xf32>
    %5 = arith.addf %2, %4 : vector<16x96xf32>
    %6 = vector.extract_strided_slice %5 {offsets = [0, 0], sizes = [16, 48], strides = [1, 1]} : vector<16x96xf32> to vector<16x48xf32>
    %7 = arith.negf %6 : vector<16x48xf32>
    %8 = math.exp %7 : vector<16x48xf32>
    %cst_5 = arith.constant 1.000000e+00 : f32
    %9 = vector.broadcast %cst_5 : f32 to vector<16x48xf32>
    %10 = arith.addf %9, %8 : vector<16x48xf32>
    %11 = arith.divf %9, %10 : vector<16x48xf32>
    %12 = vector.extract_strided_slice %5 {offsets = [0, 48], sizes = [16, 48], strides = [1, 1]} : vector<16x96xf32> to vector<16x48xf32>
    %13 = math.tanh %12 : vector<16x48xf32>
    %14 = arith.mulf %11, %13 : vector<16x48xf32>
    %15 = arith.truncf %14 : vector<16x48xf32> to vector<16x48xbf16>
    %c0_6 = arith.constant 0 : index
    %c0_7 = arith.constant 0 : index
    %16 = vector.load %arg4[%c0_6, %c0_7] : memref<48x32xbf16, #tpu.memory_space<vmem>>, vector<48x32xbf16>
    %cst_8 = arith.constant dense<0.000000e+00> : vector<16x32xf32>
    %17 = tpu.matmul %0, %16, %cst_8 {dimension_numbers = #tpu.dot_dimension_numbers<[1], [0], [0], [1], [0, 0, 1, 1], [], []>} : vector<16x48xbf16>, vector<48x32xbf16>, vector<16x32xf32> -> vector<16x32xf32>
    %c0_9 = arith.constant 0 : index
    %c0_10 = arith.constant 0 : index
    %18 = vector.load %arg5[%c0_9, %c0_10] : memref<1x32xf32, #tpu.memory_space<vmem>>, vector<1x32xf32>
    %19 = vector.broadcast %18 : vector<1x32xf32> to vector<16x32xf32>
    %20 = arith.addf %17, %19 : vector<16x32xf32>
    %21 = vector.extract_strided_slice %20 {offsets = [0, 0], sizes = [16, 16], strides = [1, 1]} : vector<16x32xf32> to vector<16x16xf32>
    %22 = arith.negf %21 : vector<16x16xf32>
    %23 = math.exp %22 : vector<16x16xf32>
    %cst_11 = arith.constant 1.000000e+00 : f32
    %24 = vector.broadcast %cst_11 : f32 to vector<16x16xf32>
    %25 = arith.addf %24, %23 : vector<16x16xf32>
    %26 = arith.divf %24, %25 : vector<16x16xf32>
    %27 = vector.extract_strided_slice %20 {offsets = [0, 16], sizes = [16, 16], strides = [1, 1]} : vector<16x32xf32> to vector<16x16xf32>
    %28 = math.tanh %27 : vector<16x16xf32>
    %29 = arith.mulf %26, %28 : vector<16x16xf32>
    %30 = arith.truncf %29 : vector<16x16xf32> to vector<16x16xbf16>
    %c0_12 = arith.constant 0 : index
    %c0_13 = arith.constant 0 : index
    %31 = vector.load %arg6[%c0_12, %c0_13] : memref<48x16xbf16, #tpu.memory_space<vmem>>, vector<48x16xbf16>
    %cst_14 = arith.constant dense<0.000000e+00> : vector<16x16xf32>
    %32 = tpu.matmul %0, %31, %cst_14 {dimension_numbers = #tpu.dot_dimension_numbers<[1], [0], [0], [1], [0, 0, 1, 1], [], []>} : vector<16x48xbf16>, vector<48x16xbf16>, vector<16x16xf32> -> vector<16x16xf32>
    %c0_15 = arith.constant 0 : index
    %c0_16 = arith.constant 0 : index
    %33 = vector.load %arg7[%c0_15, %c0_16] : memref<1x16xf32, #tpu.memory_space<vmem>>, vector<1x16xf32>
    %34 = vector.broadcast %33 : vector<1x16xf32> to vector<16x16xf32>
    %35 = arith.addf %32, %34 : vector<16x16xf32>
    %36 = vector.extract_strided_slice %35 {offsets = [0, 0], sizes = [16, 8], strides = [1, 1]} : vector<16x16xf32> to vector<16x8xf32>
    %37 = arith.negf %36 : vector<16x8xf32>
    %38 = math.exp %37 : vector<16x8xf32>
    %cst_17 = arith.constant 1.000000e+00 : f32
    %39 = vector.broadcast %cst_17 : f32 to vector<16x8xf32>
    %40 = arith.addf %39, %38 : vector<16x8xf32>
    %41 = arith.divf %39, %40 : vector<16x8xf32>
    %42 = vector.extract_strided_slice %35 {offsets = [0, 8], sizes = [16, 8], strides = [1, 1]} : vector<16x16xf32> to vector<16x8xf32>
    %43 = math.tanh %42 : vector<16x8xf32>
    %44 = arith.mulf %41, %43 : vector<16x8xf32>
    %45 = arith.truncf %44 : vector<16x8xf32> to vector<16x8xbf16>
    %c0_18 = arith.constant 0 : index
    %c0_19 = arith.constant 0 : index
    %46 = vector.load %arg8[%c0_18, %c0_19] : memref<48x48xbf16, #tpu.memory_space<vmem>>, vector<48x48xbf16>
    %cst_20 = arith.constant dense<0.000000e+00> : vector<16x48xf32>
    %47 = tpu.matmul %15, %46, %cst_20 {dimension_numbers = #tpu.dot_dimension_numbers<[1], [0], [0], [1], [0, 0, 1, 1], [], []>} : vector<16x48xbf16>, vector<48x48xbf16>, vector<16x48xf32> -> vector<16x48xf32>
    %c0_21 = arith.constant 0 : index
    %c0_22 = arith.constant 0 : index
    %48 = vector.load %arg9[%c0_21, %c0_22] : memref<16x48xbf16, #tpu.memory_space<vmem>>, vector<16x48xbf16>
    %cst_23 = arith.constant dense<0.000000e+00> : vector<16x48xf32>
    %49 = tpu.matmul %30, %48, %cst_23 {dimension_numbers = #tpu.dot_dimension_numbers<[1], [0], [0], [1], [0, 0, 1, 1], [], []>} : vector<16x16xbf16>, vector<16x48xbf16>, vector<16x48xf32> -> vector<16x48xf32>
    %50 = arith.addf %47, %49 : vector<16x48xf32>
    %c0_24 = arith.constant 0 : index
    %c0_25 = arith.constant 0 : index
    %51 = vector.load %arg10[%c0_24, %c0_25] : memref<8x48xbf16, #tpu.memory_space<vmem>>, vector<8x48xbf16>
    %cst_26 = arith.constant dense<0.000000e+00> : vector<16x48xf32>
    %52 = tpu.matmul %45, %51, %cst_26 {dimension_numbers = #tpu.dot_dimension_numbers<[1], [0], [0], [1], [0, 0, 1, 1], [], []>} : vector<16x8xbf16>, vector<8x48xbf16>, vector<16x48xf32> -> vector<16x48xf32>
    %53 = arith.addf %50, %52 : vector<16x48xf32>
    %c0_27 = arith.constant 0 : index
    %c0_28 = arith.constant 0 : index
    %54 = vector.load %arg11[%c0_27, %c0_28] : memref<1x48xf32, #tpu.memory_space<vmem>>, vector<1x48xf32>
    %55 = vector.broadcast %54 : vector<1x48xf32> to vector<16x48xf32>
    %56 = arith.addf %53, %55 : vector<16x48xf32>
    %57 = arith.truncf %56 : vector<16x48xf32> to vector<16x48xbf16>
    %c0_29 = arith.constant 0 : index
    %c0_30 = arith.constant 0 : index
    %58 = vector.load %arg12[%c0_29, %c0_30] : memref<16x48xbf16, #tpu.memory_space<vmem>>, vector<16x48xbf16>
    tpu.vector_store %arg12[%c0_29, %c0_30], %57 {strides = array<i32>} : memref<16x48xbf16, #tpu.memory_space<vmem>>, vector<16x48xbf16>,
    %cst_31 = arith.constant dense<0.000000e+00> : vector<48xf32>
    %59 = vector.multi_reduction <add>, %56, %cst_31 [0] : vector<16x48xf32> to vector<48xf32>
    %60 = vector.shape_cast %59 : vector<48xf32> to vector<1x48xf32>
    %c0_32 = arith.constant 0 : index
    %c0_33 = arith.constant 0 : index
    %c0_34 = arith.constant 0 : index
    %61 = vector.load %arg13[%c0_32, %c0_33, %c0_34] : memref<1x1x48xf32, #tpu.memory_space<vmem>>, vector<1x1x48xf32>
    %62 = vector.shape_cast %61 : vector<1x1x48xf32> to vector<1x48xf32>
    %63 = vector.shape_cast %60 : vector<1x48xf32> to vector<1x1x48xf32>
    tpu.vector_store %arg13[%c0_32, %c0_33, %c0_34], %63 {strides = array<i32>} : memref<1x1x48xf32, #tpu.memory_space<vmem>>, vector<1x1x48xf32>,
    %64 = arith.mulf %56, %56 : vector<16x48xf32>
    %cst_35 = arith.constant dense<0.000000e+00> : vector<48xf32>
    %65 = vector.multi_reduction <add>, %64, %cst_35 [0] : vector<16x48xf32> to vector<48xf32>
    %66 = vector.shape_cast %65 : vector<48xf32> to vector<1x48xf32>
    %c0_36 = arith.constant 0 : index
    %c0_37 = arith.constant 0 : index
    %c0_38 = arith.constant 0 : index
    %67 = vector.load %arg14[%c0_36, %c0_37, %c0_38] : memref<1x1x48xf32, #tpu.memory_space<vmem>>, vector<1x1x48xf32>
    %68 = vector.shape_cast %67 : vector<1x1x48xf32> to vector<1x48xf32>
    %69 = vector.shape_cast %66 : vector<1x48xf32> to vector<1x1x48xf32>
    tpu.vector_store %arg14[%c0_36, %c0_37, %c0_38], %69 {strides = array<i32>} : memref<1x1x48xf32, #tpu.memory_space<vmem>>, vector<1x1x48xf32>,
    return
  }
  func.func @transform_0(%arg0: i32) -> (i32, i32) {
    %c0_i32 = arith.constant 0 : i32
    %c0_i32_0 = arith.constant 0 : i32
    return %arg0, %c0_i32 : i32, i32
  }
  func.func @transform_1(%arg0: i32) -> (i32, i32) {
    %c0_i32 = arith.constant 0 : i32
    %c0_i32_0 = arith.constant 0 : i32
    %c0_i32_1 = arith.constant 0 : i32
    return %c0_i32, %c0_i32_0 : i32, i32
  }
  func.func @transform_2(%arg0: i32) -> (i32, i32) {
    %c0_i32 = arith.constant 0 : i32
    %c0_i32_0 = arith.constant 0 : i32
    %c0_i32_1 = arith.constant 0 : i32
    return %c0_i32, %c0_i32_0 : i32, i32
  }
  func.func @transform_3(%arg0: i32) -> (i32, i32) {
    %c0_i32 = arith.constant 0 : i32
    %c0_i32_0 = arith.constant 0 : i32
    %c0_i32_1 = arith.constant 0 : i32
    return %c0_i32, %c0_i32_0 : i32, i32
  }
  func.func @transform_4(%arg0: i32) -> (i32, i32) {
    %c0_i32 = arith.constant 0 : i32
    %c0_i32_0 = arith.constant 0 : i32
    %c0_i32_1 = arith.constant 0 : i32
    return %c0_i32, %c0_i32_0 : i32, i32
  }
  func.func @transform_5(%arg0: i32) -> (i32, i32) {
    %c0_i32 = arith.constant 0 : i32
    %c0_i32_0 = arith.constant 0 : i32
    %c0_i32_1 = arith.constant 0 : i32
    return %c0_i32, %c0_i32_0 : i32, i32
  }
  func.func @transform_6(%arg0: i32) -> (i32, i32) {
    %c0_i32 = arith.constant 0 : i32
    %c0_i32_0 = arith.constant 0 : i32
    %c0_i32_1 = arith.constant 0 : i32
    return %c0_i32, %c0_i32_0 : i32, i32
  }
  func.func @transform_7(%arg0: i32) -> (i32, i32) {
    %c0_i32 = arith.constant 0 : i32
    %c0_i32_0 = arith.constant 0 : i32
    %c0_i32_1 = arith.constant 0 : i32
    return %c0_i32, %c0_i32_0 : i32, i32
  }
  func.func @transform_8(%arg0: i32) -> (i32, i32) {
    %c0_i32 = arith.constant 0 : i32
    %c0_i32_0 = arith.constant 0 : i32
    %c0_i32_1 = arith.constant 0 : i32
    return %c0_i32, %c0_i32_0 : i32, i32
  }
  func.func @transform_9(%arg0: i32) -> (i32, i32) {
    %c0_i32 = arith.constant 0 : i32
    %c0_i32_0 = arith.constant 0 : i32
    %c0_i32_1 = arith.constant 0 : i32
    return %c0_i32, %c0_i32_0 : i32, i32
  }
  func.func @transform_10(%arg0: i32) -> (i32, i32) {
    %c0_i32 = arith.constant 0 : i32
    %c0_i32_0 = arith.constant 0 : i32
    %c0_i32_1 = arith.constant 0 : i32
    return %c0_i32, %c0_i32_0 : i32, i32
  }
  func.func @transform_11(%arg0: i32) -> (i32, i32) {
    %c0_i32 = arith.constant 0 : i32
    %c0_i32_0 = arith.constant 0 : i32
    return %arg0, %c0_i32 : i32, i32
  }
  func.func @transform_12(%arg0: i32) -> (i32, i32, i32) {
    %c0_i32 = arith.constant 0 : i32
    %c0_i32_0 = arith.constant 0 : i32
    %c0_i32_1 = arith.constant 0 : i32
    return %arg0, %c0_i32, %c0_i32_0 : i32, i32, i32
  }
  func.func @transform_13(%arg0: i32) -> (i32, i32, i32) {
    %c0_i32 = arith.constant 0 : i32
    %c0_i32_0 = arith.constant 0 : i32
    %c0_i32_1 = arith.constant 0 : i32
    return %arg0, %c0_i32, %c0_i32_0 : i32, i32, i32
  }
}

</mosaic_0001>

<llo_original>
// kernel: pyr_temp_conv.1
$region0: #{pyr_temp_conv.1}
  #allocation0 [shape = 'u32[]', space=smem, size = 0x4, offset = 0x4, fixed_abs, tag = 'smem constant byte address 0x4 - core index']
  #allocation1 [shape = 'u32[72,128]{1,0:T(1,128)}', space=vmem, size = 0x9000, scoped, tag = 'internal scratch']
  %s0 = inlined_call_operand.vmem [shape: bf16[32,48], index: 0, kind: input, shape index: {}]
  %s1 = inlined_call_operand.vmem [shape: bf16[48,96], index: 1, kind: input, shape index: {}]
  %s2 = inlined_call_operand.vmem [shape: f32[1,96], index: 2, kind: input, shape index: {}]
  %s3 = inlined_call_operand.vmem [shape: bf16[48,32], index: 3, kind: input, shape index: {}]
  %s4 = inlined_call_operand.vmem [shape: f32[1,32], index: 4, kind: input, shape index: {}]
  %s5 = inlined_call_operand.vmem [shape: bf16[48,16], index: 5, kind: input, shape index: {}]
  %s6 = inlined_call_operand.vmem [shape: f32[1,16], index: 6, kind: input, shape index: {}]
  %s7 = inlined_call_operand.vmem [shape: bf16[48,48], index: 7, kind: input, shape index: {}]
  %s8 = inlined_call_operand.vmem [shape: bf16[16,48], index: 8, kind: input, shape index: {}]
  %s9 = inlined_call_operand.vmem [shape: bf16[8,48], index: 9, kind: input, shape index: {}]
  %s10 = inlined_call_operand.vmem [shape: f32[1,48], index: 10, kind: input, shape index: {}]
  %s11 = inlined_call_operand.vmem [shape: bf16[32,48], index: 11, kind: output, shape index: {0}]
  %s12 = inlined_call_operand.vmem [shape: f32[2,1,48], index: 12, kind: output, shape index: {1}]
  %s13 = inlined_call_operand.vmem [shape: f32[2,1,48], index: 13, kind: output, shape index: {2}]
  %14 = xla_tuple %s11, %s12, %s13
  %s15 = sld [smem:[#allocation0]]
  $region93: #{pyr_temp_conv.1} parent=0
    _
  %s17 = ssub.s32 1, %s15
  %s18 = scalar_select 0, %s17, %s15
  loop: start=0, step=1, limit=4
  $region2: #{pyr_temp_conv.1} parent=0 // loop_pre_header
    _
  $region3: #{pyr_temp_conv.1} parent=0 // loop_header
    %s20 = sphi 0, %s24
    %p21 = scmp.ge.s32.totalorder %s20, 4
    %s30 = sphi 0, %s32
    %s33 = sphi 0, %s30
    %s34 = sphi 0, %s33
    %s50 = sphi 0, %s34
    %s54 = sphi 0, %s54
    %s56 = sphi 0, %s54
    %s57 = sphi 0, %s56
    %s71 = sphi 0, %s57
    %s75 = sphi 0, %s75
    %s77 = sphi 0, %s75
    %s78 = sphi 0, %s77
    %s92 = sphi 0, %s78
    %s96 = sphi 0, %s96
    %s98 = sphi 0, %s96
    %s99 = sphi 0, %s98
    %s113 = sphi 0, %s99
    %s117 = sphi 0, %s117
    %s119 = sphi 0, %s117
    %s120 = sphi 0, %s119
    %s134 = sphi 0, %s120
    %s138 = sphi 0, %s138
    %s140 = sphi 0, %s138
    %s141 = sphi 0, %s140
    %s155 = sphi 0, %s141
    %s159 = sphi 0, %s159
    %s161 = sphi 0, %s159
    %s162 = sphi 0, %s161
    %s176 = sphi 0, %s162
    %s180 = sphi 0, %s180
    %s182 = sphi 0, %s180
    %s183 = sphi 0, %s182
    %s197 = sphi 0, %s183
    %s201 = sphi 0, %s201
    %s203 = sphi 0, %s201
    %s204 = sphi 0, %s203
    %s218 = sphi 0, %s204
    %s222 = sphi 0, %s222
    %s224 = sphi 0, %s222
    %s225 = sphi 0, %s224
    %s239 = sphi 0, %s225
    %s243 = sphi 0, %s243
    %s245 = sphi 0, %s243
    %s246 = sphi 0, %s245
    %s260 = sphi 0, %s246
    %s266 = sphi 0, %s268
    %s269 = sphi 0, %s266
    %s270 = sphi 0, %s269
    %s286 = sphi 0, %s270
    %s292 = sphi 0, %s294
    %s295 = sphi 0, %s292
    %s296 = sphi 0, %s295
    %s312 = sphi 0, %s296
    %s318 = sphi 0, %s320
    %s321 = sphi 0, %s318
    %s322 = sphi 0, %s321
    %s338 = sphi 0, %s322
  $region4: #{pyr_temp_conv.1} parent=0 // loop_header_branch
    %23 = sbr.rel (%p21) target = $region8
  $region5: #{pyr_temp_conv.1} parent=0 // loop_body
    %s25 = ssub.s32 %s20, 1
    %s26 = ssub.s32 %s20, 2
    %s27 = sadd.s32 %s20, 1
    %s28 = ssub.s32 %s20, %s27
    %p29 = scmp.eq.s32.totalorder %s28, 0
    %s31 = sadd.s32 %s30, 1
    %s32 = scalar_select %p29, %s30, %s31
    %p35 = pneg %p29
    %p36 = scmp.eq.s32.totalorder %s20, 1
    %p37 = por %p35, %p36
    %p38 = scmp.ne.s32.totalorder %s30, %s33
    %p39 = scmp.eq.s32.totalorder %s20, 0
    %p40 = por %p38, %p39
    %p41 = scmp.ne.s32.totalorder %s30, %s33
    %p42 = scmp.eq.s32.totalorder %s25, 1
    %p43 = por %p41, %p42
    %p44 = scmp.ne.s32.totalorder %s33, %s34
    %p45 = scmp.eq.s32.totalorder %s25, 0
    %p46 = por %p44, %p45
    %p47 = scmp.ne.s32.totalorder %s33, %s34
    %p48 = scmp.eq.s32.totalorder %s26, 1
    %p49 = por %p47, %p48
    %p51 = scmp.ne.s32.totalorder %s34, %s50
    %p52 = scmp.eq.s32.totalorder %s26, 0
    %p53 = por %p51, %p52
    %s55 = sadd.s32 %s54, 1
    %p58 = scmp.eq.s32.totalorder %s20, 1
    %p59 = scmp.ne.s32.totalorder %s54, %s56
    %p60 = scmp.eq.s32.totalorder %s20, 0
    %p61 = por %p59, %p60
    %p62 = scmp.ne.s32.totalorder %s54, %s56
    %p63 = scmp.eq.s32.totalorder %s25, 1
    %p64 = por %p62, %p63
    %p65 = scmp.ne.s32.totalorder %s56, %s57
    %p66 = scmp.eq.s32.totalorder %s25, 0
    %p67 = por %p65, %p66
    %p68 = scmp.ne.s32.totalorder %s56, %s57
    %p69 = scmp.eq.s32.totalorder %s26, 1
    %p70 = por %p68, %p69
    %p72 = scmp.ne.s32.totalorder %s57, %s71
    %p73 = scmp.eq.s32.totalorder %s26, 0
    %p74 = por %p72, %p73
    %s76 = sadd.s32 %s75, 1
    %p79 = scmp.eq.s32.totalorder %s20, 1
    %p80 = scmp.ne.s32.totalorder %s75, %s77
    %p81 = scmp.eq.s32.totalorder %s20, 0
    %p82 = por %p80, %p81
    %p83 = scmp.ne.s32.totalorder %s75, %s77
    %p84 = scmp.eq.s32.totalorder %s25, 1
    %p85 = por %p83, %p84
    %p86 = scmp.ne.s32.totalorder %s77, %s78
    %p87 = scmp.eq.s32.totalorder %s25, 0
    %p88 = por %p86, %p87
    %p89 = scmp.ne.s32.totalorder %s77, %s78
    %p90 = scmp.eq.s32.totalorder %s26, 1
    %p91 = por %p89, %p90
    %p93 = scmp.ne.s32.totalorder %s78, %s92
    %p94 = scmp.eq.s32.totalorder %s26, 0
    %p95 = por %p93, %p94
    %s97 = sadd.s32 %s96, 1
    %p100 = scmp.eq.s32.totalorder %s20, 1
    %p101 = scmp.ne.s32.totalorder %s96, %s98
    %p102 = scmp.eq.s32.totalorder %s20, 0
    %p103 = por %p101, %p102
    %p104 = scmp.ne.s32.totalorder %s96, %s98
    %p105 = scmp.eq.s32.totalorder %s25, 1
    %p106 = por %p104, %p105
    %p107 = scmp.ne.s32.totalorder %s98, %s99
    %p108 = scmp.eq.s32.totalorder %s25, 0
    %p109 = por %p107, %p108
    %p110 = scmp.ne.s32.totalorder %s98, %s99
    %p111 = scmp.eq.s32.totalorder %s26, 1
    %p112 = por %p110, %p111
    %p114 = scmp.ne.s32.totalorder %s99, %s113
    %p115 = scmp.eq.s32.totalorder %s26, 0
    %p116 = por %p114, %p115
    %s118 = sadd.s32 %s117, 1
    %p121 = scmp.eq.s32.totalorder %s20, 1
    %p122 = scmp.ne.s32.totalorder %s117, %s119
    %p123 = scmp.eq.s32.totalorder %s20, 0
    %p124 = por %p122, %p123
    %p125 = scmp.ne.s32.totalorder %s117, %s119
    %p126 = scmp.eq.s32.totalorder %s25, 1
    %p127 = por %p125, %p126
    %p128 = scmp.ne.s32.totalorder %s119, %s120
    %p129 = scmp.eq.s32.totalorder %s25, 0
    %p130 = por %p128, %p129
    %p131 = scmp.ne.s32.totalorder %s119, %s120
    %p132 = scmp.eq.s32.totalorder %s26, 1
    %p133 = por %p131, %p132
    %p135 = scmp.ne.s32.totalorder %s120, %s134
    %p136 = scmp.eq.s32.totalorder %s26, 0
    %p137 = por %p135, %p136
    %s139 = sadd.s32 %s138, 1
    %p142 = scmp.eq.s32.totalorder %s20, 1
    %p143 = scmp.ne.s32.totalorder %s138, %s140
    %p144 = scmp.eq.s32.totalorder %s20, 0
    %p145 = por %p143, %p144
    %p146 = scmp.ne.s32.totalorder %s138, %s140
    %p147 = scmp.eq.s32.totalorder %s25, 1
    %p148 = por %p146, %p147
    %p149 = scmp.ne.s32.totalorder %s140, %s141
    %p150 = scmp.eq.s32.totalorder %s25, 0
    %p151 = por %p149, %p150
    %p152 = scmp.ne.s32.totalorder %s140, %s141
    %p153 = scmp.eq.s32.totalorder %s26, 1
    %p154 = por %p152, %p153
    %p156 = scmp.ne.s32.totalorder %s141, %s155
    %p157 = scmp.eq.s32.totalorder %s26, 0
    %p158 = por %p156, %p157
    %s160 = sadd.s32 %s159, 1
    %p163 = scmp.eq.s32.totalorder %s20, 1
    %p164 = scmp.ne.s32.totalorder %s159, %s161
    %p165 = scmp.eq.s32.totalorder %s20, 0
    %p166 = por %p164, %p165
    %p167 = scmp.ne.s32.totalorder %s159, %s161
    %p168 = scmp.eq.s32.totalorder %s25, 1
    %p169 = por %p167, %p168
    %p170 = scmp.ne.s32.totalorder %s161, %s162
    %p171 = scmp.eq.s32.totalorder %s25, 0
    %p172 = por %p170, %p171
    %p173 = scmp.ne.s32.totalorder %s161, %s162
    %p174 = scmp.eq.s32.totalorder %s26, 1
    %p175 = por %p173, %p174
    %p177 = scmp.ne.s32.totalorder %s162, %s176
    %p178 = scmp.eq.s32.totalorder %s26, 0
    %p179 = por %p177, %p178
    %s181 = sadd.s32 %s180, 1
    %p184 = scmp.eq.s32.totalorder %s20, 1
    %p185 = scmp.ne.s32.totalorder %s180, %s182
    %p186 = scmp.eq.s32.totalorder %s20, 0
    %p187 = por %p185, %p186
    %p188 = scmp.ne.s32.totalorder %s180, %s182
    %p189 = scmp.eq.s32.totalorder %s25, 1
    %p190 = por %p188, %p189
    %p191 = scmp.ne.s32.totalorder %s182, %s183
    %p192 = scmp.eq.s32.totalorder %s25, 0
    %p193 = por %p191, %p192
    %p194 = scmp.ne.s32.totalorder %s182, %s183
    %p195 = scmp.eq.s32.totalorder %s26, 1
    %p196 = por %p194, %p195
    %p198 = scmp.ne.s32.totalorder %s183, %s197
    %p199 = scmp.eq.s32.totalorder %s26, 0
    %p200 = por %p198, %p199
    %s202 = sadd.s32 %s201, 1
    %p205 = scmp.eq.s32.totalorder %s20, 1
    %p206 = scmp.ne.s32.totalorder %s201, %s203
    %p207 = scmp.eq.s32.totalorder %s20, 0
    %p208 = por %p206, %p207
    %p209 = scmp.ne.s32.totalorder %s201, %s203
    %p210 = scmp.eq.s32.totalorder %s25, 1
    %p211 = por %p209, %p210
    %p212 = scmp.ne.s32.totalorder %s203, %s204
    %p213 = scmp.eq.s32.totalorder %s25, 0
    %p214 = por %p212, %p213
    %p215 = scmp.ne.s32.totalorder %s203, %s204
    %p216 = scmp.eq.s32.totalorder %s26, 1
    %p217 = por %p215, %p216
    %p219 = scmp.ne.s32.totalorder %s204, %s218
    %p220 = scmp.eq.s32.totalorder %s26, 0
    %p221 = por %p219, %p220
    %s223 = sadd.s32 %s222, 1
    %p226 = scmp.eq.s32.totalorder %s20, 1
    %p227 = scmp.ne.s32.totalorder %s222, %s224
    %p228 = scmp.eq.s32.totalorder %s20, 0
    %p229 = por %p227, %p228
    %p230 = scmp.ne.s32.totalorder %s222, %s224
    %p231 = scmp.eq.s32.totalorder %s25, 1
    %p232 = por %p230, %p231
    %p233 = scmp.ne.s32.totalorder %s224, %s225
    %p234 = scmp.eq.s32.totalorder %s25, 0
    %p235 = por %p233, %p234
    %p236 = scmp.ne.s32.totalorder %s224, %s225
    %p237 = scmp.eq.s32.totalorder %s26, 1
    %p238 = por %p236, %p237
    %p240 = scmp.ne.s32.totalorder %s225, %s239
    %p241 = scmp.eq.s32.totalorder %s26, 0
    %p242 = por %p240, %p241
    %s244 = sadd.s32 %s243, 1
    %p247 = scmp.eq.s32.totalorder %s20, 1
    %p248 = scmp.ne.s32.totalorder %s243, %s245
    %p249 = scmp.eq.s32.totalorder %s20, 0
    %p250 = por %p248, %p249
    %p251 = scmp.ne.s32.totalorder %s243, %s245
    %p252 = scmp.eq.s32.totalorder %s25, 1
    %p253 = por %p251, %p252
    %p254 = scmp.ne.s32.totalorder %s245, %s246
    %p255 = scmp.eq.s32.totalorder %s25, 0
    %p256 = por %p254, %p255
    %p257 = scmp.ne.s32.totalorder %s245, %s246
    %p258 = scmp.eq.s32.totalorder %s26, 1
    %p259 = por %p257, %p258
    %p261 = scmp.ne.s32.totalorder %s246, %s260
    %p262 = scmp.eq.s32.totalorder %s26, 0
    %p263 = por %p261, %p262
    %s264 = ssub.s32 %s20, %s27
    %p265 = scmp.eq.s32.totalorder %s264, 0
    %s267 = sadd.s32 %s266, 1
    %s268 = scalar_select %p265, %s266, %s267
    %p271 = pneg %p265
    %p272 = scmp.eq.s32.totalorder %s20, 1
    %p273 = por %p271, %p272
    %p274 = scmp.ne.s32.totalorder %s266, %s269
    %p275 = scmp.eq.s32.totalorder %s20, 0
    %p276 = por %p274, %p275
    %p277 = scmp.ne.s32.totalorder %s266, %s269
    %p278 = scmp.eq.s32.totalorder %s25, 1
    %p279 = por %p277, %p278
    %p280 = scmp.ne.s32.totalorder %s269, %s270
    %p281 = scmp.eq.s32.totalorder %s25, 0
    %p282 = por %p280, %p281
    %p283 = scmp.ne.s32.totalorder %s269, %s270
    %p284 = scmp.eq.s32.totalorder %s26, 1
    %p285 = por %p283, %p284
    %p287 = scmp.ne.s32.totalorder %s270, %s286
    %p288 = scmp.eq.s32.totalorder %s26, 0
    %p289 = por %p287, %p288
    %s290 = ssub.s32 %s20, %s27
    %p291 = scmp.eq.s32.totalorder %s290, 0
    %s293 = sadd.s32 %s292, 1
    %s294 = scalar_select %p291, %s292, %s293
    %p297 = pneg %p291
    %p298 = scmp.eq.s32.totalorder %s20, 1
    %p299 = por %p297, %p298
    %p300 = scmp.ne.s32.totalorder %s292, %s295
    %p301 = scmp.eq.s32.totalorder %s20, 0
    %p302 = por %p300, %p301
    %p303 = scmp.ne.s32.totalorder %s292, %s295
    %p304 = scmp.eq.s32.totalorder %s25, 1
    %p305 = por %p303, %p304
    %p306 = scmp.ne.s32.totalorder %s295, %s296
    %p307 = scmp.eq.s32.totalorder %s25, 0
    %p308 = por %p306, %p307
    %p309 = scmp.ne.s32.totalorder %s295, %s296
    %p310 = scmp.eq.s32.totalorder %s26, 1
    %p311 = por %p309, %p310
    %p313 = scmp.ne.s32.totalorder %s296, %s312
    %p314 = scmp.eq.s32.totalorder %s26, 0
    %p315 = por %p313, %p314
    %s316 = ssub.s32 %s20, %s27
    %p317 = scmp.eq.s32.totalorder %s316, 0
    %s319 = sadd.s32 %s318, 1
    %s320 = scalar_select %p317, %s318, %s319
    %p323 = pneg %p317
    %p324 = scmp.eq.s32.totalorder %s20, 1
    %p325 = por %p323, %p324
    %p326 = scmp.ne.s32.totalorder %s318, %s321
    %p327 = scmp.eq.s32.totalorder %s20, 0
    %p328 = por %p326, %p327
    %p329 = scmp.ne.s32.totalorder %s318, %s321
    %p330 = scmp.eq.s32.totalorder %s25, 1
    %p331 = por %p329, %p330
    %p332 = scmp.ne.s32.totalorder %s321, %s322
    %p333 = scmp.eq.s32.totalorder %s25, 0
    %p334 = por %p332, %p333
    %p335 = scmp.ne.s32.totalorder %s321, %s322
    %p336 = scmp.eq.s32.totalorder %s26, 1
    %p337 = por %p335, %p336
    %p339 = scmp.ne.s32.totalorder %s322, %s338
    %p340 = scmp.eq.s32.totalorder %s26, 0
    %p341 = por %p339, %p340
    %p342 = scmp.le.s32.totalorder 1, %s20
    %p343 = scmp.lt.s32.totalorder %s20, 3
    %p344 = pnand %p342, %p343
    %p345 = pneg %p344
    // Predicated region
    $region9: #{pyr_temp_conv.1} parent=5 // pred_check
      _
    $region10: #{pyr_temp_conv.1} parent=5 // pred_check_branch
      %347 = sbr.rel (%p344) target = $region12
    $region11: #{pyr_temp_conv.1} parent=5 // pred_region
      %s348 = ssub.s32 %s20, 1
      // Predicated region
      $region13: #{pyr_temp_conv.1} parent=11 // pred_check
        %p349 = pneg %p67
      $region14: #{pyr_temp_conv.1} parent=11 // pred_check_branch
        %351 = sbr.rel (%p349) target = $region16
      $region15: #{pyr_temp_conv.1} parent=11 // pred_region
        _
      $region16: #{pyr_temp_conv.1} parent=11 // pred_fallthru
        _
      // Predicated region
      $region17: #{pyr_temp_conv.1} parent=11 // pred_check
        %p352 = pneg %p88
      $region18: #{pyr_temp_conv.1} parent=11 // pred_check_branch
        %354 = sbr.rel (%p352) target = $region20
      $region19: #{pyr_temp_conv.1} parent=11 // pred_region
        _
      $region20: #{pyr_temp_conv.1} parent=11 // pred_fallthru
        _
      // Predicated region
      $region21: #{pyr_temp_conv.1} parent=11 // pred_check
        %p355 = pneg %p109
      $region22: #{pyr_temp_conv.1} parent=11 // pred_check_branch
        %357 = sbr.rel (%p355) target = $region24
      $region23: #{pyr_temp_conv.1} parent=11 // pred_region
        _
      $region24: #{pyr_temp_conv.1} parent=11 // pred_fallthru
        _
      // Predicated region
      $region25: #{pyr_temp_conv.1} parent=11 // pred_check
        %p358 = pneg %p130
      $region26: #{pyr_temp_conv.1} parent=11 // pred_check_branch
        %360 = sbr.rel (%p358) target = $region28
      $region27: #{pyr_temp_conv.1} parent=11 // pred_region
        _
      $region28: #{pyr_temp_conv.1} parent=11 // pred_fallthru
        _
      // Predicated region
      $region29: #{pyr_temp_conv.1} parent=11 // pred_check
        %p361 = pneg %p151
      $region30: #{pyr_temp_conv.1} parent=11 // pred_check_branch
        %363 = sbr.rel (%p361) target = $region32
      $region31: #{pyr_temp_conv.1} parent=11 // pred_region
        _
      $region32: #{pyr_temp_conv.1} parent=11 // pred_fallthru
        _
      // Predicated region
      $region33: #{pyr_temp_conv.1} parent=11 // pred_check
        %p364 = pneg %p172
      $region34: #{pyr_temp_conv.1} parent=11 // pred_check_branch
        %366 = sbr.rel (%p364) target = $region36
      $region35: #{pyr_temp_conv.1} parent=11 // pred_region
        _
      $region36: #{pyr_temp_conv.1} parent=11 // pred_fallthru
        _
      // Predicated region
      $region37: #{pyr_temp_conv.1} parent=11 // pred_check
        %p367 = pneg %p193
      $region38: #{pyr_temp_conv.1} parent=11 // pred_check_branch
        %369 = sbr.rel (%p367) target = $region40
      $region39: #{pyr_temp_conv.1} parent=11 // pred_region
        _
      $region40: #{pyr_temp_conv.1} parent=11 // pred_fallthru
        _
      // Predicated region
      $region41: #{pyr_temp_conv.1} parent=11 // pred_check
        %p370 = pneg %p214
      $region42: #{pyr_temp_conv.1} parent=11 // pred_check_branch
        %372 = sbr.rel (%p370) target = $region44
      $region43: #{pyr_temp_conv.1} parent=11 // pred_region
        _
      $region44: #{pyr_temp_conv.1} parent=11 // pred_fallthru
        _
      // Predicated region
      $region45: #{pyr_temp_conv.1} parent=11 // pred_check
        %p373 = pneg %p235
      $region46: #{pyr_temp_conv.1} parent=11 // pred_check_branch
        %375 = sbr.rel (%p373) target = $region48
      $region47: #{pyr_temp_conv.1} parent=11 // pred_region
        _
      $region48: #{pyr_temp_conv.1} parent=11 // pred_fallthru
        _
      // Predicated region
      $region49: #{pyr_temp_conv.1} parent=11 // pred_check
        %p376 = pneg %p256
      $region50: #{pyr_temp_conv.1} parent=11 // pred_check_branch
        %378 = sbr.rel (%p376) target = $region52
      $region51: #{pyr_temp_conv.1} parent=11 // pred_region
        _
      $region52: #{pyr_temp_conv.1} parent=11 // pred_fallthru
        _
    $region12: #{pyr_temp_conv.1} parent=5 // pred_fallthru
      _
    %p379 = scmp.lt.s32.totalorder %s20, 2
    // Predicated region
    $region53: #{pyr_temp_conv.1} parent=5 // pred_check
      %p380 = pneg %p379
    $region54: #{pyr_temp_conv.1} parent=5 // pred_check_branch
      %382 = sbr.rel (%p380) target = $region56
    $region55: #{pyr_temp_conv.1} parent=5 // pred_region
      // Predicated region
      $region57: #{pyr_temp_conv.1} parent=55 // pred_check
        %p383 = pneg %p40
      $region58: #{pyr_temp_conv.1} parent=55 // pred_check_branch
        %385 = sbr.rel (%p383) target = $region60
      $region59: #{pyr_temp_conv.1} parent=55 // pred_region
        %s386 = smul.u32 2, %s20
        %p387 = scmp.lt.s32.totalorder %s386, 3
        %s388 = scalar_select %p387, %s386, 3
        %s389 = smul.addr %s388, 4
        %s390 = scalar_lea.vmem %s0, %s389
        %s391 = smul.u32 2, %s20
      $region60: #{pyr_temp_conv.1} parent=55 // pred_fallthru
        _
    $region56: #{pyr_temp_conv.1} parent=5 // pred_fallthru
      _
    %p392 = scmp.le.s32.totalorder 1, %s20
    %p393 = scmp.lt.s32.totalorder %s20, 3
    %p394 = pnand %p392, %p393
    %p395 = pneg %p394
    // Predicated region
    $region61: #{pyr_temp_conv.1} parent=5 // pred_check
      _
    $region62: #{pyr_temp_conv.1} parent=5 // pred_check_branch
      %397 = sbr.rel (%p394) target = $region64
    $region63: #{pyr_temp_conv.1} parent=5 // pred_region
      %s398 = ssub.s32 %s20, 1
      %s399 = smul.u32 2, %s25
      %p400 = scmp.lt.s32.totalorder %s399, 3
      %s401 = scalar_select %p400, %s399, 3
      %s402 = smul.addr %s401, 4
      %s403 = scalar_lea.vmem %s0, %s402
      %p404 = pneg %p46
      %p405 = pneg %p43
      %p406 = pneg %p67
      %p407 = pneg %p64
      %p408 = pneg %p88
      %p409 = pneg %p85
      %p410 = pneg %p109
      %p411 = pneg %p106
      %p412 = pneg %p130
      %p413 = pneg %p127
      %p414 = pneg %p151
      %p415 = pneg %p148
      %p416 = pneg %p172
      %p417 = pneg %p169
      %p418 = pneg %p193
      %p419 = pneg %p190
      %p420 = pneg %p214
      %p421 = pneg %p211
      %p422 = pneg %p235
      %p423 = pneg %p232
      %p424 = pneg %p256
      %p425 = pneg %p253
      %p426 = pneg %p282
      %p427 = pneg %p279
      %s428 = smul.u32 2, %s25
      %p429 = scmp.lt.s32.totalorder %s428, 3
      %s430 = scalar_select %p429, %s428, 3
      %s431 = smul.addr %s430, 4
      %s432 = scalar_lea.vmem %s11, %s431
      %p433 = pneg %p308
      %p434 = pneg %p305
      %p435 = scmp.lt.s32.totalorder %s25, 1
      %s436 = scalar_select %p435, %s25, 1
      %s437 = scalar_lea.vmem %s12, %s436
      %p438 = pneg %p334
      %p439 = pneg %p331
      %p440 = scmp.lt.s32.totalorder %s25, 1
      %s441 = scalar_select %p440, %s25, 1
      %s442 = scalar_lea.vmem %s13, %s441
      %s443 = smul.u32 2, %s25
      %p444 = scmp.lt.s32.totalorder %s443, 3
      %s445 = scalar_select %p444, %s443, 3
      %s446 = smul.addr %s445, 4
      %s447 = scalar_lea.vmem %s0, %s446
      %s448 = smul.u32 2, %s25
      %s449 = smul.u32 2, %s25
      %p450 = scmp.lt.s32.totalorder %s449, 3
      %s451 = scalar_select %p450, %s449, 3
      %s452 = smul.addr %s451, 4
      %s453 = scalar_lea.vmem %s11, %s452
      %s454 = smul.u32 2, %s25
      %p455 = scmp.lt.s32.totalorder %s25, 1
      %s456 = scalar_select %p455, %s25, 1
      %s457 = scalar_lea.vmem %s12, %s456
      %p458 = scmp.lt.s32.totalorder %s25, 1
      %s459 = scalar_select %p458, %s25, 1
      %s460 = scalar_lea.vmem %s13, %s459
      %v462 = vld [vmem:[%s447] sm:$0xf]
      %v463 = vld [vmem:[%s447 + $0x4] sm:$0xf]
      %v464 = vld [vmem:[%s1] sm:$0xf]
      %v465 = vld [vmem:[%s1 + $0x4] sm:$0xf]
      %v466 = vld [vmem:[%s1 + $0x8] sm:$0xf]
      %v467 = vld [vmem:[%s1 + $0xc] sm:$0xf]
      %v468 = vld [vmem:[%s1 + $0x10] sm:$0xf]
      %v469 = vld [vmem:[%s1 + $0x14] sm:$0xf]
      %v470 = vld [vmem:[%s2] sm:$0x1]
      %v472 = vperm.slane %v470, 0
      %v476 = vunpack.c.l.b16 %v462
      %v477 = vunpack.c.l.b16 %v463
      %v478 = vpack.c.b16 %v477, %v476
      %v485 = vunpack.c.l.b16 %v464
      %v486 = vunpack.c.l.b16 %v465
      %v487 = vunpack.c.l.b16 %v466
      %v488 = vunpack.c.l.b16 %v467
      %v489 = vunpack.c.l.b16 %v468
      %v490 = vunpack.c.l.b16 %v469
      %v491 = vpack.c.b16 %v486, %v485
      %v492 = vpack.c.b16 %v488, %v487
      %v493 = vpack.c.b16 %v490, %v489
      %vm497 = vcmask 392192
      %v499 = vsel %vm497, %v478, 0
      %501 = vmatpush.bf16.msra.mxu0 0
      %502 = vmatpush.bf16.msra.mxu0 0
      %503 = vmatpush.bf16.msra.mxu0 0
      %504 = vmatpush.bf16.msra.mxu0 0
      %505 = vmatpush.bf16.msra.mxu0 0
      %506 = vmatpush.bf16.msra.mxu0 %v493
      %507 = vmatpush.bf16.msra.mxu0 %v492
      %508 = vmatpush.bf16.msra.mxu0 %v491
      %509 = vmatmul.bf16.gmra.mxu0 %v499
      %v510 = vpop.f32.mrf.mxu0
      %v511 = vadd.f32 %v472, %v510
      %v512 = vpop.f32.mrf.mxu0
      %v513 = vadd.f32 %v472, %v512
      %514 = vdwg.mxu0
      %v515 = vxor.u32 %v511, 2147483648
      %v516 = vxor.u32 %v513, 2147483648
      %v517 = vmul.f32 %v515, 1.442695
      %v518 = vpow.pop %v517
      %v519 = vmul.f32 %v516, 1.442695
      %v520 = vpow.pop %v519
      %v521 = vadd.f32 %v518, 1.0
      %v522 = vadd.f32 %v520, 1.0
      %v523 = vrcp.pop %v521
      %v524 = vmul.f32 %v521, %v523
      %v525 = vsub.f32 1.0, %v524
      %v526 = vmul.f32 %v523, %v525
      %v527 = vadd.f32 %v523, %v526
      %vm528 = vweird.f32 %v521
      %vm529 = vweird.f32 %v523
      %vm530 = vmor %vm528, %vm529
      %v531 = vsel %vm530, %v523, %v527
      %v532 = vand.u32 2147483647, %v521
      %vm533 = vcmp.eq.f32.partialorder %v532, 8.507059e+37
      %v534 = vand.u32 %v521, 2147483648
      %v535 = vor.u32 1.1754944e-38, %v534
      %v536 = vsel %vm533, %v535, %v531
      %v537 = vmul.f32 1.0, %v536
      %v538 = vrcp.pop %v522
      %v539 = vmul.f32 %v522, %v538
      %v540 = vsub.f32 1.0, %v539
      %v541 = vmul.f32 %v538, %v540
      %v542 = vadd.f32 %v538, %v541
      %vm543 = vweird.f32 %v522
      %vm544 = vweird.f32 %v538
      %vm545 = vmor %vm543, %vm544
      %v546 = vsel %vm545, %v538, %v542
      %v547 = vand.u32 2147483647, %v522
      %vm548 = vcmp.eq.f32.partialorder %v547, 8.507059e+37
      %v549 = vand.u32 %v522, 2147483648
      %v550 = vor.u32 1.1754944e-38, %v549
      %v551 = vsel %vm548, %v550, %v546
      %v552 = vmul.f32 1.0, %v551
      %v553 = vtanh.pop %v511
      %v554 = vtanh.pop %v513
      %557 = vrot.lane.b32.xlu0 %v553, 80
      %v558 = vpop.permute.xlu0 %557
      %559 = vrot.lane.b32.xlu0 %v554, 80
      %v560 = vpop.permute.xlu0 %559
      %v563 = vmul.f32 %v537, %v558
      %v564 = vmul.f32 %v552, %v560
      %v565 = vpack.c.bf16 %v564, %v563
      %v566 = vld [vmem:[%s3] sm:$0xf]
      %v567 = vld [vmem:[%s3 + $0x4] sm:$0xf]
      %v568 = vld [vmem:[%s3 + $0x8] sm:$0xf]
      %v569 = vld [vmem:[%s3 + $0xc] sm:$0xf]
      %v570 = vld [vmem:[%s3 + $0x10] sm:$0xf]
      %v571 = vld [vmem:[%s3 + $0x14] sm:$0xf]
      %v572 = vld [vmem:[%s4] sm:$0x1]
      %v574 = vperm.slane %v572, 0
      %v582 = vunpack.c.l.b16 %v566
      %v583 = vunpack.c.l.b16 %v567
      %v584 = vunpack.c.l.b16 %v568
      %v585 = vunpack.c.l.b16 %v569
      %v586 = vunpack.c.l.b16 %v570
      %v587 = vunpack.c.l.b16 %v571
      %v588 = vpack.c.b16 %v583, %v582
      %v589 = vpack.c.b16 %v585, %v584
      %v590 = vpack.c.b16 %v587, %v586
      %594 = vmatpush.bf16.msra.mxu0 0
      %595 = vmatpush.bf16.msra.mxu0 0
      %596 = vmatpush.bf16.msra.mxu0 0
      %597 = vmatpush.bf16.msra.mxu0 0
      %598 = vmatpush.bf16.msra.mxu0 0
      %599 = vmatpush.bf16.msra.mxu0 %v590
      %600 = vmatpush.bf16.msra.mxu0 %v589
      %601 = vmatpush.bf16.msra.mxu0 %v588
      %602 = vmatmul.bf16.gmra.mxu0 %v499
      %v603 = vpop.f32.mrf.mxu0
      %v604 = vadd.f32 %v574, %v603
      %v605 = vpop.f32.mrf.mxu0
      %v606 = vadd.f32 %v574, %v605
      %607 = vdwg.mxu0
      %v608 = vxor.u32 %v604, 2147483648
      %v609 = vxor.u32 %v606, 2147483648
      %v610 = vmul.f32 %v608, 1.442695
      %v611 = vpow.pop %v610
      %v612 = vmul.f32 %v609, 1.442695
      %v613 = vpow.pop %v612
      %v614 = vadd.f32 %v611, 1.0
      %v615 = vadd.f32 %v613, 1.0
      %v616 = vrcp.pop %v614
      %v617 = vmul.f32 %v614, %v616
      %v618 = vsub.f32 1.0, %v617
      %v619 = vmul.f32 %v616, %v618
      %v620 = vadd.f32 %v616, %v619
      %vm621 = vweird.f32 %v614
      %vm622 = vweird.f32 %v616
      %vm623 = vmor %vm621, %vm622
      %v624 = vsel %vm623, %v616, %v620
      %v625 = vand.u32 2147483647, %v614
      %vm626 = vcmp.eq.f32.partialorder %v625, 8.507059e+37
      %v627 = vand.u32 %v614, 2147483648
      %v628 = vor.u32 1.1754944e-38, %v627
      %v629 = vsel %vm626, %v628, %v624
      %v630 = vmul.f32 1.0, %v629
      %v631 = vrcp.pop %v615
      %v632 = vmul.f32 %v615, %v631
      %v633 = vsub.f32 1.0, %v632
      %v634 = vmul.f32 %v631, %v633
      %v635 = vadd.f32 %v631, %v634
      %vm636 = vweird.f32 %v615
      %vm637 = vweird.f32 %v631
      %vm638 = vmor %vm636, %vm637
      %v639 = vsel %vm638, %v631, %v635
      %v640 = vand.u32 2147483647, %v615
      %vm641 = vcmp.eq.f32.partialorder %v640, 8.507059e+37
      %v642 = vand.u32 %v615, 2147483648
      %v643 = vor.u32 1.1754944e-38, %v642
      %v644 = vsel %vm641, %v643, %v639
      %v645 = vmul.f32 1.0, %v644
      %v646 = vtanh.pop %v604
      %v647 = vtanh.pop %v606
      %650 = vrot.lane.b32.xlu0 %v646, 112
      %v651 = vpop.permute.xlu0 %650
      %652 = vrot.lane.b32.xlu0 %v647, 112
      %v653 = vpop.permute.xlu0 %652
      %v656 = vmul.f32 %v630, %v651
      %v657 = vmul.f32 %v645, %v653
      %v658 = vpack.c.bf16 %v657, %v656
      %v659 = vld [vmem:[%s5] sm:$0xf]
      %v660 = vld [vmem:[%s5 + $0x4] sm:$0xf]
      %v661 = vld [vmem:[%s5 + $0x8] sm:$0xf]
      %v662 = vld [vmem:[%s5 + $0xc] sm:$0xf]
      %v663 = vld [vmem:[%s5 + $0x10] sm:$0xf]
      %v664 = vld [vmem:[%s5 + $0x14] sm:$0xf]
      %v665 = vld [vmem:[%s6] sm:$0x1]
      %v667 = vperm.slane %v665, 0
      %v675 = vunpack.c.l.b16 %v659
      %v676 = vunpack.c.l.b16 %v660
      %v677 = vunpack.c.l.b16 %v661
      %v678 = vunpack.c.l.b16 %v662
      %v679 = vunpack.c.l.b16 %v663
      %v680 = vunpack.c.l.b16 %v664
      %v681 = vpack.c.b16 %v676, %v675
      %v682 = vpack.c.b16 %v678, %v677
      %v683 = vpack.c.b16 %v680, %v679
      %687 = vmatpush.bf16.msra.mxu0 0
      %688 = vmatpush.bf16.msra.mxu0 0
      %689 = vmatpush.bf16.msra.mxu0 0
      %690 = vmatpush.bf16.msra.mxu0 0
      %691 = vmatpush.bf16.msra.mxu0 0
      %692 = vmatpush.bf16.msra.mxu0 %v683
      %693 = vmatpush.bf16.msra.mxu0 %v682
      %694 = vmatpush.bf16.msra.mxu0 %v681
      %695 = vmatmul.bf16.gmra.mxu0 %v499
      %v696 = vpop.f32.mrf.mxu0
      %v697 = vadd.f32 %v667, %v696
      %v698 = vpop.f32.mrf.mxu0
      %v699 = vadd.f32 %v667, %v698
      %700 = vdwg.mxu0
      %v701 = vxor.u32 %v697, 2147483648
      %v702 = vxor.u32 %v699, 2147483648
      %v703 = vmul.f32 %v701, 1.442695
      %v704 = vpow.pop %v703
      %v705 = vmul.f32 %v702, 1.442695
      %v706 = vpow.pop %v705
      %v707 = vadd.f32 %v704, 1.0
      %v708 = vadd.f32 %v706, 1.0
      %v709 = vrcp.pop %v707
      %v710 = vmul.f32 %v707, %v709
      %v711 = vsub.f32 1.0, %v710
      %v712 = vmul.f32 %v709, %v711
      %v713 = vadd.f32 %v709, %v712
      %vm714 = vweird.f32 %v707
      %vm715 = vweird.f32 %v709
      %vm716 = vmor %vm714, %vm715
      %v717 = vsel %vm716, %v709, %v713
      %v718 = vand.u32 2147483647, %v707
      %vm719 = vcmp.eq.f32.partialorder %v718, 8.507059e+37
      %v720 = vand.u32 %v707, 2147483648
      %v721 = vor.u32 1.1754944e-38, %v720
      %v722 = vsel %vm719, %v721, %v717
      %v723 = vmul.f32 1.0, %v722
      %v724 = vrcp.pop %v708
      %v725 = vmul.f32 %v708, %v724
      %v726 = vsub.f32 1.0, %v725
      %v727 = vmul.f32 %v724, %v726
      %v728 = vadd.f32 %v724, %v727
      %vm729 = vweird.f32 %v708
      %vm730 = vweird.f32 %v724
      %vm731 = vmor %vm729, %vm730
      %v732 = vsel %vm731, %v724, %v728
      %v733 = vand.u32 2147483647, %v708
      %vm734 = vcmp.eq.f32.partialorder %v733, 8.507059e+37
      %v735 = vand.u32 %v708, 2147483648
      %v736 = vor.u32 1.1754944e-38, %v735
      %v737 = vsel %vm734, %v736, %v732
      %v738 = vmul.f32 1.0, %v737
      %v739 = vtanh.pop %v697
      %v740 = vtanh.pop %v699
      %743 = vrot.lane.b32.xlu0 %v739, 120
      %v744 = vpop.permute.xlu0 %743
      %745 = vrot.lane.b32.xlu0 %v740, 120
      %v746 = vpop.permute.xlu0 %745
      %v749 = vmul.f32 %v723, %v744
      %v750 = vmul.f32 %v738, %v746
      %v751 = vpack.c.bf16 %v750, %v749
      %v752 = vld [vmem:[%s7] sm:$0xf]
      %v753 = vld [vmem:[%s7 + $0x4] sm:$0xf]
      %v754 = vld [vmem:[%s7 + $0x8] sm:$0xf]
      %v755 = vld [vmem:[%s7 + $0xc] sm:$0xf]
      %v756 = vld [vmem:[%s7 + $0x10] sm:$0xf]
      %v757 = vld [vmem:[%s7 + $0x14] sm:$0xf]
      %v758 = vld [vmem:[%s8] sm:$0xf]
      %v759 = vld [vmem:[%s8 + $0x4] sm:$0xf]
      %v762 = vunpack.c.l.b16 %v758
      %v763 = vunpack.c.l.b16 %v759
      %v764 = vpack.c.b16 %v763, %v762
      %vm766 = vcmask 130048
      %v768 = vsel %vm766, %v658, 0
      %770 = vmatpush.bf16.msra.mxu0 0
      %771 = vmatpush.bf16.msra.mxu0 0
      %772 = vmatpush.bf16.msra.mxu0 0
      %773 = vmatpush.bf16.msra.mxu0 0
      %774 = vmatpush.bf16.msra.mxu0 0
      %775 = vmatpush.bf16.msra.mxu0 0
      %776 = vmatpush.bf16.msra.mxu0 0
      %777 = vmatpush.bf16.msra.mxu0 %v764
      %778 = vmatmul.bf16.gmra.mxu0 %v768
      %v779 = vpop.f32.mrf.mxu0
      %v780 = vadd.f32 0.0, %v779
      %v781 = vpop.f32.mrf.mxu0
      %v782 = vadd.f32 0.0, %v781
      %783 = vdwg.mxu0
      %v790 = vunpack.c.l.b16 %v752
      %v791 = vunpack.c.l.b16 %v753
      %v792 = vunpack.c.l.b16 %v754
      %v793 = vunpack.c.l.b16 %v755
      %v794 = vunpack.c.l.b16 %v756
      %v795 = vunpack.c.l.b16 %v757
      %v796 = vpack.c.b16 %v791, %v790
      %v797 = vpack.c.b16 %v793, %v792
      %v798 = vpack.c.b16 %v795, %v794
      %v803 = vsel %vm497, %v565, 0
      %805 = vmatpush.bf16.msra.mxu0 0
      %806 = vmatpush.bf16.msra.mxu0 0
      %807 = vmatpush.bf16.msra.mxu0 0
      %808 = vmatpush.bf16.msra.mxu0 0
      %809 = vmatpush.bf16.msra.mxu0 0
      %810 = vmatpush.bf16.msra.mxu0 %v798
      %811 = vmatpush.bf16.msra.mxu0 %v797
      %812 = vmatpush.bf16.msra.mxu0 %v796
      %813 = vmatmul.bf16.gmra.mxu0 %v803
      %v814 = vpop.f32.mrf.mxu0
      %v815 = vadd.f32 %v780, %v814
      %v816 = vpop.f32.mrf.mxu0
      %v817 = vadd.f32 %v782, %v816
      %818 = vdwg.mxu0
      %v819 = vld [vmem:[%s9] sm:$0xf]
      %vm820 = vcmask 64512
      %v822 = vsel %vm820, %v751, 0
      %vm824 = vcmask 1043456
      %v826 = vsel %vm824, %v819, 0
      %828 = vmatpush.bf16.msra.mxu0 0
      %829 = vmatpush.bf16.msra.mxu0 0
      %830 = vmatpush.bf16.msra.mxu0 0
      %831 = vmatpush.bf16.msra.mxu0 0
      %832 = vmatpush.bf16.msra.mxu0 0
      %833 = vmatpush.bf16.msra.mxu0 0
      %834 = vmatpush.bf16.msra.mxu0 0
      %835 = vmatpush.bf16.msra.mxu0 %v826
      %836 = vmatmul.bf16.gmra.mxu0 %v822
      %v837 = vpop.f32.mrf.mxu0
      %v838 = vadd.f32 0.0, %v837
      %v839 = vpop.f32.mrf.mxu0
      %v840 = vadd.f32 0.0, %v839
      %841 = vdwg.mxu0
      %v842 = vadd.f32 %v815, %v838
      %v843 = vadd.f32 %v817, %v840
      %v844 = vld [vmem:[%s10] sm:$0x1]
      %v846 = vperm.slane %v844, 0
      %v848 = vadd.f32 %v842, %v846
      %v849 = vadd.f32 %v843, %v846
      %v850 = vpack.c.bf16 %v848, %v848
      %v851 = vpack.c.bf16 %v849, %v849
      %vm852 = vcmask 388096
      %853 = vst.msk [vmem:[%s453] sm:$0xf] %vm852, %v850
      %854 = vst.msk [vmem:[%s453 + $0x4] sm:$0xf] %vm852, %v851
      %v855 = vsel %vm497, %v848, 0.0
      %v856 = vsel %vm497, %v849, 0.0
      %v857 = vadd.f32 %v855, %v856
      %v858 = vrot.slane %v857, 4
      %v859 = vadd.f32 %v857, %v858
      %v860 = vrot.slane %v859, 2
      %v861 = vadd.f32 %v859, %v860
      %v862 = vrot.slane %v861, 1
      %v863 = vadd.f32 %v861, %v862
      %vm864 = vcmask 385024
      %865 = vst.msk [vmem:[%s457] sm:$0x1] %vm864, %v863
      %v866 = vmul.f32 %v848, %v848
      %v867 = vmul.f32 %v849, %v849
      %v868 = vsel %vm497, %v866, 0.0
      %v869 = vsel %vm497, %v867, 0.0
      %v870 = vadd.f32 %v868, %v869
      %v871 = vrot.slane %v870, 4
      %v872 = vadd.f32 %v870, %v871
      %v873 = vrot.slane %v872, 2
      %v874 = vadd.f32 %v872, %v873
      %v875 = vrot.slane %v874, 1
      %v876 = vadd.f32 %v874, %v875
      %877 = vst.msk [vmem:[%s460] sm:$0x1] %vm864, %v876
      %s878 = smul.u32 2, %s25
      %p879 = scmp.lt.s32.totalorder %s878, 3
      %s880 = scalar_select %p879, %s878, 3
      %s881 = smul.addr %s880, 4
      %s882 = scalar_lea.vmem %s11, %s881
      %p883 = scmp.lt.s32.totalorder %s25, 1
      %s884 = scalar_select %p883, %s25, 1
      %s885 = scalar_lea.vmem %s12, %s884
      %p886 = scmp.lt.s32.totalorder %s25, 1
      %s887 = scalar_select %p886, %s25, 1
      %s888 = scalar_lea.vmem %s13, %s887
      // Predicated region
      $region65: #{pyr_temp_conv.1} parent=63 // pred_check
        %p889 = pneg %p279
      $region66: #{pyr_temp_conv.1} parent=63 // pred_check_branch
        %891 = sbr.rel (%p889) target = $region68
      $region67: #{pyr_temp_conv.1} parent=63 // pred_region
        %s892 = smul.u32 2, %s25
      $region68: #{pyr_temp_conv.1} parent=63 // pred_fallthru
        _
      // Predicated region
      $region69: #{pyr_temp_conv.1} parent=63 // pred_check
        %p893 = pneg %p305
      $region70: #{pyr_temp_conv.1} parent=63 // pred_check_branch
        %895 = sbr.rel (%p893) target = $region72
      $region71: #{pyr_temp_conv.1} parent=63 // pred_region
        _
      $region72: #{pyr_temp_conv.1} parent=63 // pred_fallthru
        _
      // Predicated region
      $region73: #{pyr_temp_conv.1} parent=63 // pred_check
        %p896 = pneg %p331
      $region74: #{pyr_temp_conv.1} parent=63 // pred_check_branch
        %898 = sbr.rel (%p896) target = $region76
      $region75: #{pyr_temp_conv.1} parent=63 // pred_region
        _
      $region76: #{pyr_temp_conv.1} parent=63 // pred_fallthru
        _
    $region64: #{pyr_temp_conv.1} parent=5 // pred_fallthru
      _
    %p899 = scmp.le.s32.totalorder 2, %s20
    // Predicated region
    $region77: #{pyr_temp_conv.1} parent=5 // pred_check
      %p900 = pneg %p899
    $region78: #{pyr_temp_conv.1} parent=5 // pred_check_branch
      %902 = sbr.rel (%p900) target = $region80
    $region79: #{pyr_temp_conv.1} parent=5 // pred_region
      %s903 = ssub.s32 %s20, 2
      // Predicated region
      $region81: #{pyr_temp_conv.1} parent=79 // pred_check
        %p904 = pneg %p285
      $region82: #{pyr_temp_conv.1} parent=79 // pred_check_branch
        %906 = sbr.rel (%p904) target = $region84
      $region83: #{pyr_temp_conv.1} parent=79 // pred_region
        %s907 = smul.u32 2, %s26
        %p908 = scmp.lt.s32.totalorder %s907, 3
        %s909 = scalar_select %p908, %s907, 3
        %s910 = smul.addr %s909, 4
        %s911 = scalar_lea.vmem %s11, %s910
      $region84: #{pyr_temp_conv.1} parent=79 // pred_fallthru
        _
      // Predicated region
      $region85: #{pyr_temp_conv.1} parent=79 // pred_check
        %p912 = pneg %p311
      $region86: #{pyr_temp_conv.1} parent=79 // pred_check_branch
        %914 = sbr.rel (%p912) target = $region88
      $region87: #{pyr_temp_conv.1} parent=79 // pred_region
        %p915 = scmp.lt.s32.totalorder %s26, 1
        %s916 = scalar_select %p915, %s26, 1
        %s917 = scalar_lea.vmem %s12, %s916
      $region88: #{pyr_temp_conv.1} parent=79 // pred_fallthru
        _
      // Predicated region
      $region89: #{pyr_temp_conv.1} parent=79 // pred_check
        %p918 = pneg %p337
      $region90: #{pyr_temp_conv.1} parent=79 // pred_check_branch
        %920 = sbr.rel (%p918) target = $region92
      $region91: #{pyr_temp_conv.1} parent=79 // pred_region
        %p921 = scmp.lt.s32.totalorder %s26, 1
        %s922 = scalar_select %p921, %s26, 1
        %s923 = scalar_lea.vmem %s13, %s922
      $region92: #{pyr_temp_conv.1} parent=79 // pred_fallthru
        _
    $region80: #{pyr_temp_conv.1} parent=5 // pred_fallthru
      _
  $region6: #{pyr_temp_conv.1} parent=0 // loop_footer
    %s24 = sadd.s32 1, %s20
  $region7: #{pyr_temp_conv.1} parent=0 // loop_footer_branch
    %19 = sbr.rel target = $region3
  $region8: #{pyr_temp_conv.1} parent=0 // loop_exit
    _

</llo_original>
